<compile_context>
chip_gen: v7x
topology: tpu7x:2x2x1
jax: 0.10.0
libtpu: 0.0.40
codegen_flags: <defaults>
</compile_context>

<pallas_src>
import numpy as np
import jax
import jax.numpy as jnp
from jax.experimental import pallas as pl
from jax.experimental.pallas import tpu as pltpu


# ---------------------------------------------------------------------------
# Operator construction (host-side numpy, folded pad -> upsample -> crop)
# ---------------------------------------------------------------------------
def _upsample_operator(size_in: int, scale: int, npad: int, mode: str) -> np.ndarray:
    """Dense 1-D operator (scale*size_in, size_in) equal to
    crop( upsample_1d( circular_pad_1d(x) ) ) for the given nn.Upsample mode."""
    padded = size_in + 2 * npad
    up = scale * padded
    crop0 = scale * npad
    rows = np.arange(crop0, up - crop0)                      # kept output rows
    A = np.zeros((rows.size, padded), dtype=np.float32)      # upsample on padded axis
    if mode == "nearest":
        src = np.floor(rows.astype(np.float64) / scale).astype(np.int64)
        src = np.clip(src, 0, padded - 1)
        A[np.arange(rows.size), src] = 1.0
    elif mode == "bilinear":
        # PyTorch bilinear, align_corners=False (half-pixel centers), separable factor.
        src = (rows.astype(np.float64) + 0.5) / scale - 0.5
        src = np.maximum(src, 0.0)
        x0 = np.clip(np.floor(src).astype(np.int64), 0, padded - 1)
        x1 = np.minimum(x0 + 1, padded - 1)
        w1 = (src - x0).astype(np.float32)
        w0 = 1.0 - w1
        np.add.at(A, (np.arange(rows.size), x0), w0)
        np.add.at(A, (np.arange(rows.size), x1), w1)
    else:
        raise ValueError(f"unsupported mode: {mode}")  # TODO(synk): bicubic etc.
    # circular-pad operator P: padded index p reads input index (p - npad) mod size_in
    P = np.zeros((padded, size_in), dtype=np.float32)
    P[np.arange(padded), (np.arange(padded) - npad) % size_in] = 1.0
    return (A @ P).astype(np.float32)                        # (scale*size_in, size_in)


# ---------------------------------------------------------------------------
# Kernels
# ---------------------------------------------------------------------------
def _kron_kernel(x_ref, kt_ref, o_ref):
    # x_ref: (TM, H*W)   kt_ref: (H*W, CN)   o_ref: (TM, CN)  -- lane-dense GEMM
    o_ref[...] = jnp.dot(
        x_ref[...], kt_ref[...], preferred_element_type=jnp.float32
    ).astype(o_ref.dtype)


def _two_pass_flat_kernel(x_ref, bh_ref, bwt_ref, o_ref):
    # x_ref:   (TB*H, W)        TB images with rows pre-flattened (H % 8 == 0)
    # bh_ref:  (Hout, H)        height operator (grid-invariant)
    # bwt_ref: (W, Wout)        width operator, pre-transposed (grid-invariant)
    # o_ref:   (TB, Hout, Wout)
    tb, hout, wout = o_ref.shape
    h = bh_ref.shape[1]
    # (a) width: ONE flattened GEMM so the MXU sees M = TB*H rows.
    t = jnp.dot(x_ref[...], bwt_ref[...], preferred_element_type=jnp.float32)
    # bf16 path: cast the f32 intermediate back so the second matmul stays in
    # bf16-operand / f32-accumulate mode (no-op for f32).  The reshape only splits
    # the sublane axis at an 8-aligned boundary (H % 8 == 0) so it is layout-free.
    t = t.astype(bwt_ref.dtype).reshape(tb, h, wout)
    # (b) height: one batched contraction (flash-attention style einsum), no
    # per-image Python unroll.  The operator broadcast happens once per step.
    bh_b = jnp.broadcast_to(bh_ref[...], (tb, hout, h))
    o = jnp.einsum("boh,bhw->bow", bh_b, t, preferred_element_type=jnp.float32)
    o_ref[...] = o.astype(o_ref.dtype)


def _two_pass_batched_kernel(x_ref, bh_ref, bwt_ref, o_ref):
    # Fallback when H % 8 != 0 (the flattened reshape would need a sublane
    # relayout): both contractions as single batched einsums, still no unroll.
    tb, hout, wout = o_ref.shape
    _, h, w = x_ref.shape
    bwt_b = jnp.broadcast_to(bwt_ref[...], (tb, w, wout))
    t = jnp.einsum("bhw,bwo->bho", x_ref[...], bwt_b,
                   preferred_element_type=jnp.float32)
    t = t.astype(bwt_ref.dtype)
    bh_b = jnp.broadcast_to(bh_ref[...], (tb, hout, h))
    o = jnp.einsum("boh,bhw->bow", bh_b, t, preferred_element_type=jnp.float32)
    o_ref[...] = o.astype(o_ref.dtype)


# ---------------------------------------------------------------------------
# Tiling / VMEM helpers (generation-aware)
# ---------------------------------------------------------------------------
def _vmem_budget_bytes() -> int:
    """Per-core VMEM budget with headroom for compiler-internal scratch.
    v5e/v6e (128 MiB) -> 64 MiB, v7x (64 MiB) -> 40 MiB."""
    cap = 64 * 1024 * 1024
    try:
        info = pltpu.get_tpu_info()
        cap = int(getattr(info, "vmem_capacity_bytes", cap)) or cap
    except Exception:
        pass
    return max(16 * 1024 * 1024, min(cap - 24 * 1024 * 1024, 64 * 1024 * 1024))


def _invariant_spec(block_shape, index_map):
    """Grid-invariant operand: single-buffer it when this JAX supports it."""
    buffered = getattr(pl, "Buffered", None)
    if buffered is not None:
        try:
            return pl.BlockSpec(block_shape, index_map, pipeline_mode=buffered(1))
        except (TypeError, ValueError):
            pass
    return pl.BlockSpec(block_shape, index_map)


def _choose_m_tile(m: int, fits, cap: int = 512) -> int:
    """Largest multiple-of-8 divisor of m (<= cap) giving >=2 steps that fits."""
    best = None
    for tm in range(8, min(m, cap) + 1, 8):
        if m % tm or m // tm < 2:
            continue
        if fits(tm):
            best = tm
    return best if best is not None else m


def _choose_batch_tile(m: int, fits, cap: int = 64) -> int:
    """Largest divisor of m (<= cap) that fits the budget and keeps >=2 steps."""
    best = 1
    for tb in range(1, min(m, cap) + 1):
        if m % tb:
            continue
        if m >= 2 and m // tb < 2:
            continue           # keep >=2 grid steps so both v7x TCs get work
        if fits(tb):
            best = tb
    return best


def _split_columns(hwout: int) -> int:
    """Largest proper divisor of hwout that is a multiple of 128 (>=2 blocks)."""
    best = hwout
    for cn in range(128, hwout // 2 + 1, 128):
        if hwout % cn == 0:
            best = cn
    return best


# ---------------------------------------------------------------------------
# Public wrapper
# ---------------------------------------------------------------------------
def periodic_upsample(x: jnp.ndarray, *, mode: str = "bilinear",
                      scale_factor: int = 2, npad: int = 10) -> jnp.ndarray:
    N, C, H, W = x.shape
    assert npad <= H and npad <= W, "circular pad must not exceed the spatial size"
    Hout, Wout = scale_factor * H, scale_factor * W
    M, hw, hwout = N * C, H * W, Hout * Wout
    out_dtype = x.dtype
    out_esize = jnp.dtype(out_dtype).itemsize

    # bf16 inputs keep bf16 operands on the MXU (f32 accumulate); everything else
    # is computed in f32 (no in-kernel up-casts of the data path).
    if x.dtype == jnp.bfloat16:
        op_dtype, xin, esize = jnp.bfloat16, x, 2
    else:
        op_dtype, esize = jnp.float32, 4
        xin = x if x.dtype == jnp.float32 else x.astype(jnp.float32)

    bh = _upsample_operator(H, scale_factor, npad, mode)      # (Hout, H) f32
    bw = _upsample_operator(W, scale_factor, npad, mode)      # (Wout, W) f32
    budget = _vmem_budget_bytes()

    # ---------- Path A: fused Kronecker GEMM (lane-dense output) ----------
    kt_bytes = hw * hwout * esize                             # dtype-aware threshold
    if kt_bytes <= min(16 * 1024 * 1024, budget // 2):
        kt = jnp.asarray(np.kron(bh, bw).T, dtype=op_dtype)   # (H*W, Hout*Wout)
        xf = xin.reshape(M, hw)

        def fits_a(tm):
            return (2 * tm * hw * esize + kt_bytes
                    + 2 * tm * hwout * out_esize + tm * hwout * 4) <= budget

        tm = _choose_m_tile(M, fits_a)
        # Guarantee a >=2-step "parallel" grid for v7x's two TensorCores: if the
        # row grid is a single step, split the output columns in >=128-lane blocks.
        cn = hwout if M // tm >= 2 else _split_columns(hwout)
        kt_spec = (_invariant_spec((hw, hwout), lambda i, j: (0, 0))
                   if cn == hwout
                   else pl.BlockSpec((hw, cn), lambda i, j: (0, j)))

        kt_copies = 1 if cn == hwout else 2
        est = (2 * tm * hw * esize + kt_copies * hw * cn * esize
               + 2 * tm * cn * out_esize + tm * cn * 4)
        params = dict(dimension_semantics=("parallel", "parallel"))
        if est > 12 * 1024 * 1024:
            params["vmem_limit_bytes"] = int(min(budget, est + 8 * 1024 * 1024))

        cost = pl.CostEstimate(
            flops=2 * M * hw * hwout, transcendentals=0,
            bytes_accessed=(M * hw + hw * hwout) * esize + M * hwout * out_esize)

        out = pl.pallas_call(
            _kron_kernel,
            out_shape=jax.ShapeDtypeStruct((M, hwout), out_dtype),
            grid_spec=pltpu.PrefetchScalarGridSpec(
                num_scalar_prefetch=0,
                grid=(M // tm, hwout // cn),
                in_specs=[pl.BlockSpec((tm, hw), lambda i, j: (i, 0)), kt_spec],
                out_specs=pl.BlockSpec((tm, cn), lambda i, j: (i, j)),
            ),
            compiler_params=pltpu.CompilerParams(**params),
            cost_estimate=cost,
        )(xf, kt)
        return out.reshape(N, C, Hout, Wout)

    # ---------- Path B: flattened width GEMM + batched height einsum ----------
    bh_j = jnp.asarray(bh, dtype=op_dtype)                    # (Hout, H)
    bwt_j = jnp.asarray(bw.T, dtype=op_dtype)                 # (W, Wout)

    def fits_b(tb):
        pipeline = 2 * tb * (hw * esize + hwout * out_esize)  # double-buffered x/out
        operators = (Hout * H + W * Wout) * esize             # single-buffered
        live = tb * (H * Wout * (4 + esize) + Hout * H * esize + hwout * 4)
        return pipeline + operators + live <= budget

    tb = _choose_batch_tile(M, fits_b)
    est = (2 * tb * (hw * esize + hwout * out_esize)
           + 2 * (Hout * H + W * Wout) * esize
           + tb * (H * Wout * (4 + esize) + Hout * H * esize + hwout * 4))
    params = dict(dimension_semantics=("parallel",))
    if est > 12 * 1024 * 1024:
        # v5e's default scoped VMEM is only 16 MiB (v6e/v7x: 32 MiB): raise the
        # limit whenever the estimate may exceed it, capped at the physical budget.
        params["vmem_limit_bytes"] = int(min(budget, est + 8 * 1024 * 1024))
    # TODO(synk): banded 2-tap stencil / block-banded matmul (tile Wout) for very
    # large H,W where dense operators approach v7x's 64 MiB VMEM.

    cost = pl.CostEstimate(
        flops=2 * M * H * Wout * (W + Hout), transcendentals=0,
        bytes_accessed=(M * hw * esize + M * hwout * out_esize
                        + (Hout * H + W * Wout) * esize))

    bh_spec = _invariant_spec((Hout, H), lambda i: (0, 0))
    bwt_spec = _invariant_spec((W, Wout), lambda i: (0, 0))
    # NOTE: for Wout < 128 the output block's last dim is below one lane tile, so
    # stores are masked (vst.msk); shapes whose Kronecker operator fits ~16 MiB are
    # already routed to lane-dense Path A above (see TODO for the remaining cases).
    out_spec = pl.BlockSpec((tb, Hout, Wout), lambda i: (i, 0, 0))

    if H % 8 == 0:
        xf = xin.reshape(M * H, W)                            # free, contiguous
        x_spec = pl.BlockSpec((tb * H, W), lambda i: (i, 0))
        kernel = _two_pass_flat_kernel
    else:
        xf = xin.reshape(M, H, W)
        x_spec = pl.BlockSpec((tb, H, W), lambda i: (i, 0, 0))
        kernel = _two_pass_batched_kernel

    out = pl.pallas_call(
        kernel,
        out_shape=jax.ShapeDtypeStruct((M, Hout, Wout), out_dtype),
        grid_spec=pltpu.PrefetchScalarGridSpec(
            num_scalar_prefetch=0,
            grid=(M // tb,),
            in_specs=[x_spec, bh_spec, bwt_spec],
            out_specs=out_spec,
        ),
        compiler_params=pltpu.CompilerParams(**params),
        cost_estimate=cost,
    )(xf, bh_j, bwt_j)
    return out.reshape(N, C, Hout, Wout)


# ---------------------------------------------------------------------------
# Plain-JAX reference (circular pad -> resize -> crop, matches PyTorch semantics)
# ---------------------------------------------------------------------------
def _reference(x, *, mode="bilinear", scale_factor=2, npad=10):
    xp = jnp.pad(x, ((0, 0), (0, 0), (npad, npad), (npad, npad)), mode="wrap")
    N, C, Hp, Wp = xp.shape
    method = "nearest" if mode == "nearest" else "linear"
    up = jax.image.resize(xp, (N, C, scale_factor * Hp, scale_factor * Wp),
                          method=method, antialias=False)
    s = scale_factor * npad
    return up[..., s:-s, s:-s]


if __name__ == "__main__":
    key = jax.random.PRNGKey(0)
    N, C, H, W = 2, 4, 16, 16
    x = jax.random.normal(key, (N, C, H, W), dtype=jnp.float32)

    # Path A (fused Kronecker GEMM), bilinear
    out = jax.block_until_ready(
        periodic_upsample(x, mode="bilinear", scale_factor=2, npad=10))
    assert out.shape == (N, C, 2 * H, 2 * W), out.shape
    ref = _reference(x, mode="bilinear", scale_factor=2, npad=10)
    assert float(jnp.max(jnp.abs(out - ref))) < 1e-4, float(jnp.max(jnp.abs(out - ref)))

    # Path A, nearest (exact copies of input values)
    outn = jax.block_until_ready(
        periodic_upsample(x, mode="nearest", scale_factor=2, npad=10))
    refn = _reference(x, mode="nearest", scale_factor=2, npad=10)
    assert float(jnp.max(jnp.abs(outn - refn))) < 1e-4

    # Path B (flattened width GEMM + batched height einsum), larger spatial size
    H2 = W2 = 40
    x2 = jax.random.normal(jax.random.PRNGKey(1), (N, C, H2, W2), dtype=jnp.float32)
    out2 = jax.block_until_ready(
        periodic_upsample(x2, mode="bilinear", scale_factor=2, npad=10))
    assert out2.shape == (N, C, 2 * H2, 2 * W2), out2.shape
    ref2 = _reference(x2, mode="bilinear", scale_factor=2, npad=10)
    assert float(jnp.max(jnp.abs(out2 - ref2))) < 1e-4, float(jnp.max(jnp.abs(out2 - ref2)))

    # bf16 Path B smoke test (bf16 operands on the MXU, f32 accumulation)
    x2b = x2.astype(jnp.bfloat16)
    out2b = jax.block_until_ready(
        periodic_upsample(x2b, mode="bilinear", scale_factor=2, npad=10))
    assert out2b.dtype == jnp.bfloat16 and out2b.shape == (N, C, 2 * H2, 2 * W2)
    err_b = float(jnp.max(jnp.abs(out2b.astype(jnp.float32) - ref2)))
    assert err_b < 0.25, err_b

    print("KERNEL_OK")
</pallas_src>

<mosaic_0001>
module attributes {stable_mosaic.version = 11 : i64} {
  func.func @_kron_kernel(%arg0: i32, %arg1: i32, %arg2: memref<8x256xf32, #tpu.memory_space<vmem>>, %arg3: memref<256x512xf32, #tpu.memory_space<vmem>>, %arg4: memref<8x512xf32, #tpu.memory_space<vmem>>) attributes {dimension_semantics = [#tpu.dimension_semantics<parallel>, #tpu.dimension_semantics<parallel>], iteration_bounds = array<i64: 1, 2>, scalar_prefetch = 0 : i64, scratch_operands = 0 : i64, tpu.core_type = #tpu.core_type<tc>, window_params = [{transform_indices = @transform_0, window_bounds = array<i64: 8, 256>}, {transform_indices = @transform_1, window_bounds = array<i64: 256, 512>}, {transform_indices = @transform_2, window_bounds = array<i64: 8, 512>}]} {
    %c0 = arith.constant 0 : index
    %c0_0 = arith.constant 0 : index
    %0 = vector.load %arg2[%c0, %c0_0] : memref<8x256xf32, #tpu.memory_space<vmem>>, vector<8x256xf32>
    %c0_1 = arith.constant 0 : index
    %c0_2 = arith.constant 0 : index
    %1 = vector.load %arg3[%c0_1, %c0_2] : memref<256x512xf32, #tpu.memory_space<vmem>>, vector<256x512xf32>
    %cst = arith.constant dense<0.000000e+00> : vector<8x512xf32>
    %2 = tpu.matmul %0, %1, %cst {dimension_numbers = #tpu.dot_dimension_numbers<[1], [0], [0], [1], [0, 0, 1, 1], [], []>} : vector<8x256xf32>, vector<256x512xf32>, vector<8x512xf32> -> vector<8x512xf32>
    %c0_3 = arith.constant 0 : index
    %c0_4 = arith.constant 0 : index
    %3 = vector.load %arg4[%c0_3, %c0_4] : memref<8x512xf32, #tpu.memory_space<vmem>>, vector<8x512xf32>
    tpu.vector_store %arg4[%c0_3, %c0_4], %2 {strides = array<i32>} : memref<8x512xf32, #tpu.memory_space<vmem>>, vector<8x512xf32>,
    return
  }
  func.func @transform_0(%arg0: i32, %arg1: i32) -> (i32, i32) {
    %c0_i32 = arith.constant 0 : i32
    %c0_i32_0 = arith.constant 0 : i32
    return %arg0, %c0_i32 : i32, i32
  }
  func.func @transform_1(%arg0: i32, %arg1: i32) -> (i32, i32) {
    %c0_i32 = arith.constant 0 : i32
    %c0_i32_0 = arith.constant 0 : i32
    return %c0_i32, %arg1 : i32, i32
  }
  func.func @transform_2(%arg0: i32, %arg1: i32) -> (i32, i32) {
    %c0_i32 = arith.constant 0 : i32
    return %arg0, %arg1 : i32, i32
  }
}

</mosaic_0001>

<llo_original>
// kernel: tpu_custom_call.1
$region0: #{tpu_custom_call.1}
  #allocation0 [shape = 'u32[]', space=smem, size = 0x4, offset = 0x4, fixed_abs, tag = 'smem constant byte address 0x4 - core index']
  #allocation1 [shape = 'u32[144,128]{1,0:T(1,128)}', space=vmem, size = 0x12000, scoped, tag = 'internal scratch']
  %s0 = inlined_call_operand.hbm [shape: f32[8,256], index: 0, kind: input, shape index: {}]
  %s1 = inlined_call_operand.hbm [shape: f32[256,1024], index: 1, kind: input, shape index: {}]
  %s2 = inlined_call_operand.hbm [shape: f32[8,1024], index: 2, kind: output, shape index: {}]
  %s3 = sld [smem:[#allocation0]]
  $region49: #{tpu_custom_call.1} parent=0
    _
  %s5 = ssub.s32 1, %s3
  %s6 = scalar_select 0, %s5, %s3
  $region1: #{tpu_custom_call.1} parent=0
    #allocation2 [shape = 'u8[8192]{0}', space=vmem, size = 0x2000, scoped, tag = 'input window, operand 0, single buffered']
    #allocation3 [shape = 's32[2]{0}', space=sflag, size = 0x8, scoped, tag = 'scoped memory for tpu_custom_call.1']
    #allocation4 [shape = 's32[2]{0}', space=sflag, size = 0x8, scoped, tag = 'scoped memory for tpu_custom_call.1']
    #allocation5 [shape = 'u8[1048576]{0}', space=vmem, size = 0x100000, scoped, tag = 'input window, operand 1']
    #allocation6 [shape = 's32[2]{0}', space=sflag, size = 0x8, scoped, tag = 'scoped memory for tpu_custom_call.1']
    #allocation7 [shape = 'u8[32768]{0}', space=vmem, size = 0x8000, scoped, tag = 'output window, operand 0']
    %7 = vsyncpa [#allocation3], 0
    %8 = vsyncpa [#allocation6], 0
    %s9 = scalar_lea.sflag [#allocation6], 1
    %10 = vsyncpa %s9, 0
    %11 = vsyncpa [#allocation4], 0
    %s12 = scalar_lea.sflag [#allocation4], 1
    %13 = vsyncpa %s12, 0
    loop: start=0, step=1, limit=4
    $region2: #{tpu_custom_call.1} parent=1 // loop_pre_header
      _
    $region3: #{tpu_custom_call.1} parent=1 // loop_header
      %s15 = sphi 0, %s19
      %p16 = scmp.ge.s32.totalorder %s15, 4
      %s22 = sphi 0, %s34
      %s23 = sphi 0, %s30
      %s24 = sphi 0, %s22
      %s25 = sphi 0, %s23
      %s26 = sphi 0, %s24
      %s27 = sphi 0, %s25
      %s37 = sphi 0, %s39
      %s40 = sphi 0, %s37
      %s41 = sphi 0, %s40
      %s57 = sphi 0, %s41
      %s63 = sphi 0, %s65
      %s66 = sphi 0, %s63
      %s67 = sphi 0, %s66
      %s83 = sphi 0, %s67
      %s91 = sphi 0, %s93
      %s94 = sphi 0, %s91
      %s95 = sphi 0, %s94
      %s111 = sphi 0, %s95
    $region4: #{tpu_custom_call.1} parent=1 // loop_header_branch
      %18 = sbr.rel (%p16) target = $region8
    $region5: #{tpu_custom_call.1} parent=1 // loop_body
      %s20 = ssub.s32 %s15, 1
      %s21 = ssub.s32 %s15, 2
      %s28 = sadd.s32 1, %s23
      %p29 = scmp.ge.s32.totalorder %s28, 2
      %s30 = scalar_select %p29, 0, %s28
      %s31 = sadd.s32 1, %s22
      %s32 = scalar_select %p29, %s31, %s22
      %p33 = scmp.ge.s32.totalorder %s32, 1
      %s34 = scalar_select %p33, 0, %s32
      %s35 = ssub.s32 %s22, %s34
      %p36 = scmp.eq.s32.totalorder %s35, 0
      %s38 = sadd.s32 %s37, 1
      %s39 = scalar_select %p36, %s37, %s38
      %p42 = pneg %p36
      %p43 = scmp.eq.s32.totalorder %s15, 1
      %p44 = por %p42, %p43
      %p45 = scmp.ne.s32.totalorder %s37, %s40
      %p46 = scmp.eq.s32.totalorder %s15, 0
      %p47 = por %p45, %p46
      %p48 = scmp.ne.s32.totalorder %s37, %s40
      %p49 = scmp.eq.s32.totalorder %s20, 1
      %p50 = por %p48, %p49
      %p51 = scmp.ne.s32.totalorder %s40, %s41
      %p52 = scmp.eq.s32.totalorder %s20, 0
      %p53 = por %p51, %p52
      %p54 = scmp.ne.s32.totalorder %s40, %s41
      %p55 = scmp.eq.s32.totalorder %s21, 1
      %p56 = por %p54, %p55
      %p58 = scmp.ne.s32.totalorder %s41, %s57
      %p59 = scmp.eq.s32.totalorder %s21, 0
      %p60 = por %p58, %p59
      %s61 = ssub.s32 %s23, %s30
      %p62 = scmp.eq.s32.totalorder %s61, 0
      %s64 = sadd.s32 %s63, 1
      %s65 = scalar_select %p62, %s63, %s64
      %p68 = pneg %p62
      %p69 = scmp.eq.s32.totalorder %s15, 1
      %p70 = por %p68, %p69
      %p71 = scmp.ne.s32.totalorder %s63, %s66
      %p72 = scmp.eq.s32.totalorder %s15, 0
      %p73 = por %p71, %p72
      %p74 = scmp.ne.s32.totalorder %s63, %s66
      %p75 = scmp.eq.s32.totalorder %s20, 1
      %p76 = por %p74, %p75
      %p77 = scmp.ne.s32.totalorder %s66, %s67
      %p78 = scmp.eq.s32.totalorder %s20, 0
      %p79 = por %p77, %p78
      %p80 = scmp.ne.s32.totalorder %s66, %s67
      %p81 = scmp.eq.s32.totalorder %s21, 1
      %p82 = por %p80, %p81
      %p84 = scmp.ne.s32.totalorder %s67, %s83
      %p85 = scmp.eq.s32.totalorder %s21, 0
      %p86 = por %p84, %p85
      %s87 = ssub.s32 %s22, %s34
      %s88 = ssub.s32 %s23, %s30
      %s89 = sor.u32 %s87, %s88
      %p90 = scmp.eq.s32.totalorder %s89, 0
      %s92 = sadd.s32 %s91, 1
      %s93 = scalar_select %p90, %s91, %s92
      %p96 = pneg %p90
      %p97 = scmp.eq.s32.totalorder %s15, 1
      %p98 = por %p96, %p97
      %p99 = scmp.ne.s32.totalorder %s91, %s94
      %p100 = scmp.eq.s32.totalorder %s15, 0
      %p101 = por %p99, %p100
      %p102 = scmp.ne.s32.totalorder %s91, %s94
      %p103 = scmp.eq.s32.totalorder %s20, 1
      %p104 = por %p102, %p103
      %p105 = scmp.ne.s32.totalorder %s94, %s95
      %p106 = scmp.eq.s32.totalorder %s20, 0
      %p107 = por %p105, %p106
      %p108 = scmp.ne.s32.totalorder %s94, %s95
      %p109 = scmp.eq.s32.totalorder %s21, 1
      %p110 = por %p108, %p109
      %p112 = scmp.ne.s32.totalorder %s95, %s111
      %p113 = scmp.eq.s32.totalorder %s21, 0
      %p114 = por %p112, %p113
      %p115 = scmp.le.s32.totalorder 1, %s15
      %p116 = scmp.lt.s32.totalorder %s15, 3
      %p117 = pnand %p115, %p116
      %p118 = pneg %p117
      // Predicated region
      $region9: #{tpu_custom_call.1} parent=5 // pred_check
        _
      $region10: #{tpu_custom_call.1} parent=5 // pred_check_branch
        %120 = sbr.rel (%p117) target = $region12
      $region11: #{tpu_custom_call.1} parent=5 // pred_region
        %s121 = ssub.s32 %s15, 1
        // Predicated region
        $region13: #{tpu_custom_call.1} parent=11 // pred_check
          %p122 = pneg %p53
        $region14: #{tpu_custom_call.1} parent=11 // pred_check_branch
          %124 = sbr.rel (%p122) target = $region16
        $region15: #{tpu_custom_call.1} parent=11 // pred_region
          %s126 = ssub.s32 256, 256
          %127 = vsyncadd [#allocation3], %s126
          %s128 = smul.addr %s24, 2
          %s129 = smul.addr %s128, 128
          %s130 = scalar_lea.hbm %s0, %s129
          %s132 = sshll.u32 [#allocation2], 4
          %s133 = int_to_ptr.vmem [resolvable:$true] %s132
          %135 = dma.hbm_to_vmem [thread:$0]  %s130, 256, %s133, [#allocation3]
        $region16: #{tpu_custom_call.1} parent=11 // pred_fallthru
          _
      $region12: #{tpu_custom_call.1} parent=5 // pred_fallthru
        _
      %p136 = scmp.lt.s32.totalorder %s15, 2
      // Predicated region
      $region17: #{tpu_custom_call.1} parent=5 // pred_check
        %p137 = pneg %p136
      $region18: #{tpu_custom_call.1} parent=5 // pred_check_branch
        %139 = sbr.rel (%p137) target = $region20
      $region19: #{tpu_custom_call.1} parent=5 // pred_region
        // Predicated region
        $region21: #{tpu_custom_call.1} parent=19 // pred_check
          %p140 = pneg %p73
        $region22: #{tpu_custom_call.1} parent=19 // pred_check_branch
          %142 = sbr.rel (%p140) target = $region24
        $region23: #{tpu_custom_call.1} parent=19 // pred_region
          %s143 = sand.u32 %s63, 1
          %s144 = scalar_lea.sflag [#allocation6], %s143
          %s145 = sand.u32 %s63, 1
          %s146 = smul.addr %s145, 1024
          %s147 = scalar_lea.vmem [#allocation5], %s146
          %s148 = smul.u32 4, %s23
          %s150 = ssub.s32 16384, 16384
          %151 = vsyncadd %s144, %s150
          %s152 = smul.addr %s148, 128
          %s153 = scalar_lea.hbm %s1, %s152
          %s154 = sshll.u32 %s147, 4
          %s155 = int_to_ptr.vmem [resolvable:$true] %s154
          %160 = dma.hbm_to_vmem [thread:$0]  %s153, 16384, %s155, %s144, 1024, 512, 32
        $region24: #{tpu_custom_call.1} parent=19 // pred_fallthru
          _
      $region20: #{tpu_custom_call.1} parent=5 // pred_fallthru
        _
      %p161 = scmp.le.s32.totalorder 1, %s15
      %p162 = scmp.lt.s32.totalorder %s15, 3
      %p163 = pnand %p161, %p162
      %p164 = pneg %p163
      // Predicated region
      $region25: #{tpu_custom_call.1} parent=5 // pred_check
        _
      $region26: #{tpu_custom_call.1} parent=5 // pred_check_branch
        %166 = sbr.rel (%p163) target = $region28
      $region27: #{tpu_custom_call.1} parent=5 // pred_region
        %s167 = ssub.s32 %s15, 1
        // Predicated region
        $region29: #{tpu_custom_call.1} parent=27 // pred_check
          %p168 = pneg %p53
        $region30: #{tpu_custom_call.1} parent=27 // pred_check_branch
          %170 = sbr.rel (%p168) target = $region32
        $region31: #{tpu_custom_call.1} parent=27 // pred_region
          %171 = dma.done [#allocation3], 256
        $region32: #{tpu_custom_call.1} parent=27 // pred_fallthru
          _
        %s172 = sand.u32 %s66, 1
        %s173 = scalar_lea.sflag [#allocation6], %s172
        %s174 = sand.u32 %s66, 1
        %s175 = smul.addr %s174, 1024
        %s176 = scalar_lea.vmem [#allocation5], %s175
        // Predicated region
        $region33: #{tpu_custom_call.1} parent=27 // pred_check
          %p177 = pneg %p79
        $region34: #{tpu_custom_call.1} parent=27 // pred_check_branch
          %179 = sbr.rel (%p177) target = $region36
        $region35: #{tpu_custom_call.1} parent=27 // pred_region
          %180 = dma.done %s173, 16384
        $region36: #{tpu_custom_call.1} parent=27 // pred_fallthru
          _
        %p181 = pneg %p53
        %p182 = pneg %p50
        %s183 = sand.u32 %s66, 1
        %s184 = scalar_lea.sflag [#allocation6], %s183
        %s185 = sand.u32 %s66, 1
        %s186 = smul.addr %s185, 1024
        %s187 = scalar_lea.vmem [#allocation5], %s186
        %p188 = pneg %p79
        %p189 = pneg %p76
        %p190 = pneg %p107
        %p191 = pneg %p104
        %s192 = sand.u32 %s94, 1
        %s193 = scalar_lea.sflag [#allocation4], %s192
        %s194 = sand.u32 %s94, 1
        %s195 = smul.addr %s194, 32
        %s196 = scalar_lea.vmem [#allocation7], %s195
        %s197 = smul.u32 4, %s25
        %s198 = smul.u32 4, %s25
        %v199 = vld [vmem:[#allocation2] sm:$0xff]
        %v200 = vld [vmem:[#allocation2 + $0x8] sm:$0xff]
        %v201 = vld [vmem:[%s176] sm:$0xff]
        %v202 = vld [vmem:[%s176 + $0x8] sm:$0xff]
        %v203 = vld [vmem:[%s176 + $0x10] sm:$0xff]
        %v204 = vld [vmem:[%s176 + $0x18] sm:$0xff]
        %v205 = vld [vmem:[%s176 + $0x20] sm:$0xff]
        %v206 = vld [vmem:[%s176 + $0x28] sm:$0xff]
        %v207 = vld [vmem:[%s176 + $0x30] sm:$0xff]
        %v208 = vld [vmem:[%s176 + $0x38] sm:$0xff]
        %v209 = vld [vmem:[%s176 + $0x40] sm:$0xff]
        %v210 = vld [vmem:[%s176 + $0x48] sm:$0xff]
        %v211 = vld [vmem:[%s176 + $0x50] sm:$0xff]
        %v212 = vld [vmem:[%s176 + $0x58] sm:$0xff]
        %v213 = vld [vmem:[%s176 + $0x60] sm:$0xff]
        %v214 = vld [vmem:[%s176 + $0x68] sm:$0xff]
        %v215 = vld [vmem:[%s176 + $0x70] sm:$0xff]
        %v216 = vld [vmem:[%s176 + $0x78] sm:$0xff]
        %v217 = vld [vmem:[%s176 + $0x80] sm:$0xff]
        %v218 = vld [vmem:[%s176 + $0x88] sm:$0xff]
        %v219 = vld [vmem:[%s176 + $0x90] sm:$0xff]
        %v220 = vld [vmem:[%s176 + $0x98] sm:$0xff]
        %v221 = vld [vmem:[%s176 + $0xa0] sm:$0xff]
        %v222 = vld [vmem:[%s176 + $0xa8] sm:$0xff]
        %v223 = vld [vmem:[%s176 + $0xb0] sm:$0xff]
        %v224 = vld [vmem:[%s176 + $0xb8] sm:$0xff]
        %v225 = vld [vmem:[%s176 + $0xc0] sm:$0xff]
        %v226 = vld [vmem:[%s176 + $0xc8] sm:$0xff]
        %v227 = vld [vmem:[%s176 + $0xd0] sm:$0xff]
        %v228 = vld [vmem:[%s176 + $0xd8] sm:$0xff]
        %v229 = vld [vmem:[%s176 + $0xe0] sm:$0xff]
        %v230 = vld [vmem:[%s176 + $0xe8] sm:$0xff]
        %v231 = vld [vmem:[%s176 + $0xf0] sm:$0xff]
        %v232 = vld [vmem:[%s176 + $0xf8] sm:$0xff]
        %v233 = vld [vmem:[%s176 + $0x100] sm:$0xff]
        %v234 = vld [vmem:[%s176 + $0x108] sm:$0xff]
        %v235 = vld [vmem:[%s176 + $0x110] sm:$0xff]
        %v236 = vld [vmem:[%s176 + $0x118] sm:$0xff]
        %v237 = vld [vmem:[%s176 + $0x120] sm:$0xff]
        %v238 = vld [vmem:[%s176 + $0x128] sm:$0xff]
        %v239 = vld [vmem:[%s176 + $0x130] sm:$0xff]
        %v240 = vld [vmem:[%s176 + $0x138] sm:$0xff]
        %v241 = vld [vmem:[%s176 + $0x140] sm:$0xff]
        %v242 = vld [vmem:[%s176 + $0x148] sm:$0xff]
        %v243 = vld [vmem:[%s176 + $0x150] sm:$0xff]
        %v244 = vld [vmem:[%s176 + $0x158] sm:$0xff]
        %v245 = vld [vmem:[%s176 + $0x160] sm:$0xff]
        %v246 = vld [vmem:[%s176 + $0x168] sm:$0xff]
        %v247 = vld [vmem:[%s176 + $0x170] sm:$0xff]
        %v248 = vld [vmem:[%s176 + $0x178] sm:$0xff]
        %v249 = vld [vmem:[%s176 + $0x180] sm:$0xff]
        %v250 = vld [vmem:[%s176 + $0x188] sm:$0xff]
        %v251 = vld [vmem:[%s176 + $0x190] sm:$0xff]
        %v252 = vld [vmem:[%s176 + $0x198] sm:$0xff]
        %v253 = vld [vmem:[%s176 + $0x1a0] sm:$0xff]
        %v254 = vld [vmem:[%s176 + $0x1a8] sm:$0xff]
        %v255 = vld [vmem:[%s176 + $0x1b0] sm:$0xff]
        %v256 = vld [vmem:[%s176 + $0x1b8] sm:$0xff]
        %v257 = vld [vmem:[%s176 + $0x1c0] sm:$0xff]
        %v258 = vld [vmem:[%s176 + $0x1c8] sm:$0xff]
        %v259 = vld [vmem:[%s176 + $0x1d0] sm:$0xff]
        %v260 = vld [vmem:[%s176 + $0x1d8] sm:$0xff]
        %v261 = vld [vmem:[%s176 + $0x1e0] sm:$0xff]
        %v262 = vld [vmem:[%s176 + $0x1e8] sm:$0xff]
        %v263 = vld [vmem:[%s176 + $0x1f0] sm:$0xff]
        %v264 = vld [vmem:[%s176 + $0x1f8] sm:$0xff]
        %v265 = vld [vmem:[%s176 + $0x200] sm:$0xff]
        %v266 = vld [vmem:[%s176 + $0x208] sm:$0xff]
        %v267 = vld [vmem:[%s176 + $0x210] sm:$0xff]
        %v268 = vld [vmem:[%s176 + $0x218] sm:$0xff]
        %v269 = vld [vmem:[%s176 + $0x220] sm:$0xff]
        %v270 = vld [vmem:[%s176 + $0x228] sm:$0xff]
        %v271 = vld [vmem:[%s176 + $0x230] sm:$0xff]
        %v272 = vld [vmem:[%s176 + $0x238] sm:$0xff]
        %v273 = vld [vmem:[%s176 + $0x240] sm:$0xff]
        %v274 = vld [vmem:[%s176 + $0x248] sm:$0xff]
        %v275 = vld [vmem:[%s176 + $0x250] sm:$0xff]
        %v276 = vld [vmem:[%s176 + $0x258] sm:$0xff]
        %v277 = vld [vmem:[%s176 + $0x260] sm:$0xff]
        %v278 = vld [vmem:[%s176 + $0x268] sm:$0xff]
        %v279 = vld [vmem:[%s176 + $0x270] sm:$0xff]
        %v280 = vld [vmem:[%s176 + $0x278] sm:$0xff]
        %v281 = vld [vmem:[%s176 + $0x280] sm:$0xff]
        %v282 = vld [vmem:[%s176 + $0x288] sm:$0xff]
        %v283 = vld [vmem:[%s176 + $0x290] sm:$0xff]
        %v284 = vld [vmem:[%s176 + $0x298] sm:$0xff]
        %v285 = vld [vmem:[%s176 + $0x2a0] sm:$0xff]
        %v286 = vld [vmem:[%s176 + $0x2a8] sm:$0xff]
        %v287 = vld [vmem:[%s176 + $0x2b0] sm:$0xff]
        %v288 = vld [vmem:[%s176 + $0x2b8] sm:$0xff]
        %v289 = vld [vmem:[%s176 + $0x2c0] sm:$0xff]
        %v290 = vld [vmem:[%s176 + $0x2c8] sm:$0xff]
        %v291 = vld [vmem:[%s176 + $0x2d0] sm:$0xff]
        %v292 = vld [vmem:[%s176 + $0x2d8] sm:$0xff]
        %v293 = vld [vmem:[%s176 + $0x2e0] sm:$0xff]
        %v294 = vld [vmem:[%s176 + $0x2e8] sm:$0xff]
        %v295 = vld [vmem:[%s176 + $0x2f0] sm:$0xff]
        %v296 = vld [vmem:[%s176 + $0x2f8] sm:$0xff]
        %v297 = vld [vmem:[%s176 + $0x300] sm:$0xff]
        %v298 = vld [vmem:[%s176 + $0x308] sm:$0xff]
        %v299 = vld [vmem:[%s176 + $0x310] sm:$0xff]
        %v300 = vld [vmem:[%s176 + $0x318] sm:$0xff]
        %v301 = vld [vmem:[%s176 + $0x320] sm:$0xff]
        %v302 = vld [vmem:[%s176 + $0x328] sm:$0xff]
        %v303 = vld [vmem:[%s176 + $0x330] sm:$0xff]
        %v304 = vld [vmem:[%s176 + $0x338] sm:$0xff]
        %v305 = vld [vmem:[%s176 + $0x340] sm:$0xff]
        %v306 = vld [vmem:[%s176 + $0x348] sm:$0xff]
        %v307 = vld [vmem:[%s176 + $0x350] sm:$0xff]
        %v308 = vld [vmem:[%s176 + $0x358] sm:$0xff]
        %v309 = vld [vmem:[%s176 + $0x360] sm:$0xff]
        %v310 = vld [vmem:[%s176 + $0x368] sm:$0xff]
        %v311 = vld [vmem:[%s176 + $0x370] sm:$0xff]
        %v312 = vld [vmem:[%s176 + $0x378] sm:$0xff]
        %v313 = vld [vmem:[%s176 + $0x380] sm:$0xff]
        %v314 = vld [vmem:[%s176 + $0x388] sm:$0xff]
        %v315 = vld [vmem:[%s176 + $0x390] sm:$0xff]
        %v316 = vld [vmem:[%s176 + $0x398] sm:$0xff]
        %v317 = vld [vmem:[%s176 + $0x3a0] sm:$0xff]
        %v318 = vld [vmem:[%s176 + $0x3a8] sm:$0xff]
        %v319 = vld [vmem:[%s176 + $0x3b0] sm:$0xff]
        %v320 = vld [vmem:[%s176 + $0x3b8] sm:$0xff]
        %v321 = vld [vmem:[%s176 + $0x3c0] sm:$0xff]
        %v322 = vld [vmem:[%s176 + $0x3c8] sm:$0xff]
        %v323 = vld [vmem:[%s176 + $0x3d0] sm:$0xff]
        %v324 = vld [vmem:[%s176 + $0x3d8] sm:$0xff]
        %v325 = vld [vmem:[%s176 + $0x3e0] sm:$0xff]
        %v326 = vld [vmem:[%s176 + $0x3e8] sm:$0xff]
        %v327 = vld [vmem:[%s176 + $0x3f0] sm:$0xff]
        %v328 = vld [vmem:[%s176 + $0x3f8] sm:$0xff]
        %329 = vmatprep.subr.mxu0 %v202
        %330 = vmatpush1.msra.mxu0 %v201
        %331 = vmatprep.subr.mxu0 %v206
        %332 = vmatpush1.msra.mxu0 %v205
        %333 = vmatprep.subr.mxu0 %v210
        %334 = vmatpush1.msra.mxu0 %v209
        %335 = vmatprep.subr.mxu0 %v214
        %336 = vmatpush1.msra.mxu0 %v213
        %337 = vmatprep.subr.mxu0 %v218
        %338 = vmatpush1.msra.mxu0 %v217
        %339 = vmatprep.subr.mxu0 %v222
        %340 = vmatpush1.msra.mxu0 %v221
        %341 = vmatprep.subr.mxu0 %v226
        %342 = vmatpush1.msra.mxu0 %v225
        %343 = vmatprep.subr.mxu0 %v230
        %344 = vmatpush1.msra.mxu0 %v229
        %345 = vmatprep.subr.mxu0 %v234
        %346 = vmatpush1.msra.mxu0 %v233
        %347 = vmatprep.subr.mxu0 %v238
        %348 = vmatpush1.msra.mxu0 %v237
        %349 = vmatprep.subr.mxu0 %v242
        %350 = vmatpush1.msra.mxu0 %v241
        %351 = vmatprep.subr.mxu0 %v246
        %352 = vmatpush1.msra.mxu0 %v245
        %353 = vmatprep.subr.mxu0 %v250
        %354 = vmatpush1.msra.mxu0 %v249
        %355 = vmatprep.subr.mxu0 %v254
        %356 = vmatpush1.msra.mxu0 %v253
        %357 = vmatprep.subr.mxu0 %v258
        %358 = vmatpush1.msra.mxu0 %v257
        %359 = vmatprep.subr.mxu0 %v262
        %360 = vmatpush1.msra.mxu0 %v261
        %361 = vmatprep.subr.mxu0 %v266
        %362 = vmatpush1.msra.mxu0 %v265
        %363 = vmatprep.subr.mxu0 %v270
        %364 = vmatpush1.msra.mxu0 %v269
        %365 = vmatprep.subr.mxu0 %v274
        %366 = vmatpush1.msra.mxu0 %v273
        %367 = vmatprep.subr.mxu0 %v278
        %368 = vmatpush1.msra.mxu0 %v277
        %369 = vmatprep.subr.mxu0 %v282
        %370 = vmatpush1.msra.mxu0 %v281
        %371 = vmatprep.subr.mxu0 %v286
        %372 = vmatpush1.msra.mxu0 %v285
        %373 = vmatprep.subr.mxu0 %v290
        %374 = vmatpush1.msra.mxu0 %v289
        %375 = vmatprep.subr.mxu0 %v294
        %376 = vmatpush1.msra.mxu0 %v293
        %377 = vmatprep.subr.mxu0 %v298
        %378 = vmatpush1.msra.mxu0 %v297
        %379 = vmatprep.subr.mxu0 %v302
        %380 = vmatpush1.msra.mxu0 %v301
        %381 = vmatprep.subr.mxu0 %v306
        %382 = vmatpush1.msra.mxu0 %v305
        %383 = vmatprep.subr.mxu0 %v310
        %384 = vmatpush1.msra.mxu0 %v309
        %385 = vmatprep.subr.mxu0 %v314
        %386 = vmatpush1.msra.mxu0 %v313
        %387 = vmatprep.subr.mxu0 %v318
        %388 = vmatpush1.msra.mxu0 %v317
        %389 = vmatprep.subr.mxu0 %v322
        %390 = vmatpush1.msra.mxu0 %v321
        %391 = vmatprep.subr.mxu0 %v326
        %392 = vmatpush1.msra.mxu0 %v325
        %393 = vmatprep.mubr.f32.mxu0 %v200
        %394 = vmatmul.mubr.f32.gmra.mrb[0].mxu0 %v199
        %v395 = vpop.f32.mrb[0].mxu0
        %v396 = vadd.f32 0.0, %v395
        %v397 = vpop.f32.mrb[0].mxu0
        %v398 = vadd.f32 0.0, %v397
        %399 = vdwg.mxu0
        %400 = vmatprep.subr.mxu0 %v204
        %401 = vmatpush1.msra.mxu0 %v203
        %402 = vmatprep.subr.mxu0 %v208
        %403 = vmatpush1.msra.mxu0 %v207
        %404 = vmatprep.subr.mxu0 %v212
        %405 = vmatpush1.msra.mxu0 %v211
        %406 = vmatprep.subr.mxu0 %v216
        %407 = vmatpush1.msra.mxu0 %v215
        %408 = vmatprep.subr.mxu0 %v220
        %409 = vmatpush1.msra.mxu0 %v219
        %410 = vmatprep.subr.mxu0 %v224
        %411 = vmatpush1.msra.mxu0 %v223
        %412 = vmatprep.subr.mxu0 %v228
        %413 = vmatpush1.msra.mxu0 %v227
        %414 = vmatprep.subr.mxu0 %v232
        %415 = vmatpush1.msra.mxu0 %v231
        %416 = vmatprep.subr.mxu0 %v236
        %417 = vmatpush1.msra.mxu0 %v235
        %418 = vmatprep.subr.mxu0 %v240
        %419 = vmatpush1.msra.mxu0 %v239
        %420 = vmatprep.subr.mxu0 %v244
        %421 = vmatpush1.msra.mxu0 %v243
        %422 = vmatprep.subr.mxu0 %v248
        %423 = vmatpush1.msra.mxu0 %v247
        %424 = vmatprep.subr.mxu0 %v252
        %425 = vmatpush1.msra.mxu0 %v251
        %426 = vmatprep.subr.mxu0 %v256
        %427 = vmatpush1.msra.mxu0 %v255
        %428 = vmatprep.subr.mxu0 %v260
        %429 = vmatpush1.msra.mxu0 %v259
        %430 = vmatprep.subr.mxu0 %v264
        %431 = vmatpush1.msra.mxu0 %v263
        %432 = vmatprep.subr.mxu0 %v268
        %433 = vmatpush1.msra.mxu0 %v267
        %434 = vmatprep.subr.mxu0 %v272
        %435 = vmatpush1.msra.mxu0 %v271
        %436 = vmatprep.subr.mxu0 %v276
        %437 = vmatpush1.msra.mxu0 %v275
        %438 = vmatprep.subr.mxu0 %v280
        %439 = vmatpush1.msra.mxu0 %v279
        %440 = vmatprep.subr.mxu0 %v284
        %441 = vmatpush1.msra.mxu0 %v283
        %442 = vmatprep.subr.mxu0 %v288
        %443 = vmatpush1.msra.mxu0 %v287
        %444 = vmatprep.subr.mxu0 %v292
        %445 = vmatpush1.msra.mxu0 %v291
        %446 = vmatprep.subr.mxu0 %v296
        %447 = vmatpush1.msra.mxu0 %v295
        %448 = vmatprep.subr.mxu0 %v300
        %449 = vmatpush1.msra.mxu0 %v299
        %450 = vmatprep.subr.mxu0 %v304
        %451 = vmatpush1.msra.mxu0 %v303
        %452 = vmatprep.subr.mxu0 %v308
        %453 = vmatpush1.msra.mxu0 %v307
        %454 = vmatprep.subr.mxu0 %v312
        %455 = vmatpush1.msra.mxu0 %v311
        %456 = vmatprep.subr.mxu0 %v316
        %457 = vmatpush1.msra.mxu0 %v315
        %458 = vmatprep.subr.mxu0 %v320
        %459 = vmatpush1.msra.mxu0 %v319
        %460 = vmatprep.subr.mxu0 %v324
        %461 = vmatpush1.msra.mxu0 %v323
        %462 = vmatprep.subr.mxu0 %v328
        %463 = vmatpush1.msra.mxu0 %v327
        %464 = vmatprep.mubr.f32.mxu0 %v200
        %465 = vmatmul.mubr.f32.gmra.mrb[0].mxu0 %v199
        %v466 = vpop.f32.mrb[0].mxu0
        %v467 = vadd.f32 0.0, %v466
        %v468 = vpop.f32.mrb[0].mxu0
        %v469 = vadd.f32 0.0, %v468
        %470 = vdwg.mxu0
        %471 = vst [vmem:[%s196] sm:$0xff] %v396
        %472 = vst [vmem:[%s196 + $0x8] sm:$0xff] %v398
        %473 = vst [vmem:[%s196 + $0x10] sm:$0xff] %v467
        %474 = vst [vmem:[%s196 + $0x18] sm:$0xff] %v469
        %s475 = sand.u32 %s94, 1
        %s476 = scalar_lea.sflag [#allocation4], %s475
        %s477 = sand.u32 %s94, 1
        %s478 = smul.addr %s477, 32
        %s479 = scalar_lea.vmem [#allocation7], %s478
        // Predicated region
        $region37: #{tpu_custom_call.1} parent=27 // pred_check
          %p480 = pneg %p104
        $region38: #{tpu_custom_call.1} parent=27 // pred_check_branch
          %482 = sbr.rel (%p480) target = $region40
        $region39: #{tpu_custom_call.1} parent=27 // pred_region
          %s483 = smul.u32 4, %s25
          %s485 = ssub.s32 512, 512
          %486 = vsyncadd %s476, %s485
          %s487 = smul.addr %s24, 8
          %s488 = sadd.s32 %s483, %s487
          %s489 = smul.addr %s488, 128
          %s490 = scalar_lea.hbm %s2, %s489
          %s492 = sshll.u32 %s479, 4
          %s493 = int_to_ptr.vmem [resolvable:$true] %s492
          %495 = dma.vmem_to_hbm [thread:$0]  %s493, 512, %s490, %s476
        $region40: #{tpu_custom_call.1} parent=27 // pred_fallthru
          _
      $region28: #{tpu_custom_call.1} parent=5 // pred_fallthru
        _
      %p496 = scmp.le.s32.totalorder 2, %s15
      // Predicated region
      $region41: #{tpu_custom_call.1} parent=5 // pred_check
        %p497 = pneg %p496
      $region42: #{tpu_custom_call.1} parent=5 // pred_check_branch
        %499 = sbr.rel (%p497) target = $region44
      $region43: #{tpu_custom_call.1} parent=5 // pred_region
        %s500 = ssub.s32 %s15, 2
        // Predicated region
        $region45: #{tpu_custom_call.1} parent=43 // pred_check
          %p501 = pneg %p110
        $region46: #{tpu_custom_call.1} parent=43 // pred_check_branch
          %503 = sbr.rel (%p501) target = $region48
        $region47: #{tpu_custom_call.1} parent=43 // pred_region
          %s504 = sand.u32 %s95, 1
          %s505 = scalar_lea.sflag [#allocation4], %s504
          %s506 = sand.u32 %s95, 1
          %s507 = smul.addr %s506, 32
          %s508 = scalar_lea.vmem [#allocation7], %s507
          %509 = dma.done %s505, 512
        $region48: #{tpu_custom_call.1} parent=43 // pred_fallthru
          _
      $region44: #{tpu_custom_call.1} parent=5 // pred_fallthru
        _
    $region6: #{tpu_custom_call.1} parent=1 // loop_footer
      %s19 = sadd.s32 1, %s15
    $region7: #{tpu_custom_call.1} parent=1 // loop_footer_branch
      %14 = sbr.rel target = $region3
    $region8: #{tpu_custom_call.1} parent=1 // loop_exit
      _
    %510 = vsyncpa [#allocation3], 1
    %s511 = scalar_lea.sflag [#allocation3], 1
    %512 = vsyncpa %s511, 1
    %513 = vsyncpa [#allocation6], 1
    %s514 = scalar_lea.sflag [#allocation6], 1
    %515 = vsyncpa %s514, 1
    %516 = vsyncpa [#allocation4], 1
    %s517 = scalar_lea.sflag [#allocation4], 1
    %518 = vsyncpa %s517, 1

</llo_original>
